<compile_context>
chip_gen: v7x
topology: tpu7x:2x2x1
jax: 0.10.0
libtpu: 0.0.40
codegen_flags: <defaults>
</compile_context>

<pallas_src>
import math
import numpy as np
import jax
import jax.numpy as jnp
from jax.experimental import pallas as pl
from jax.experimental.pallas import tpu as pltpu


def _round_up(x, m):
    return (x + m - 1) // m * m


# ---------------------- Kernel 1: per-token handshaking FC halves ---------------------- #
def _precompute_kernel(hid_ref, w1t_ref, w2t_ref, bfc_ref, pre1_ref, pre2_ref):
    # hid_ref : (1, Tp, H) f32    w1t/w2t : (H, H) bf16    bfc : (1, H) f32
    # pre1/pre2 outputs : (1, Tp, H) bf16
    h = hid_ref[0].astype(jnp.bfloat16)                                   # (Tp, H)
    p1 = jnp.dot(h, w1t_ref[...], preferred_element_type=jnp.float32)     # acts on h_i
    p2 = jnp.dot(h, w2t_ref[...], preferred_element_type=jnp.float32)     # acts on h_j
    p2 = p2 + bfc_ref[...]                                                # bias folded once
    pre1_ref[0] = p1.astype(pre1_ref.dtype)
    pre2_ref[0] = p2.astype(pre2_ref.dtype)


# ------------------- Kernel 2: (TI, TJ) pair tile -> all head logits ------------------- #
def _pair_logits_kernel(pre1_ref, pre2_ref, wallt_ref, ball_ref, out_ref):
    # pre1_ref : (1, TI, H) bf16     pre2_ref : (1, TJ, H) bf16
    # wallt_ref: (H, DP)   bf16      ball_ref : (1, DP)   f32
    # out_ref  : (1, TI, TJ, DP)     f32
    p1 = pre1_ref[0].astype(jnp.float32)                                  # (TI, H)
    p2 = pre2_ref[0].astype(jnp.float32)                                  # (TJ, H)
    ti, h = p1.shape
    tj = p2.shape[0]
    # shaking(i, j) = tanh(pre1[i] + pre2[j]) ; fp32 elementwise + EUP tanh (v5e-safe)
    shaking = jnp.tanh(p1[:, None, :] + p2[None, :, :])                   # (TI, TJ, H)
    sh = shaking.reshape(ti * tj, h).astype(jnp.bfloat16)
    logits = jnp.dot(sh, wallt_ref[...], preferred_element_type=jnp.float32)
    logits = logits + ball_ref[...]                                       # (TI*TJ, DP)
    out_ref[0] = logits.reshape(out_ref.shape[1:]).astype(out_ref.dtype)


# --------------------------------------- Wrapper --------------------------------------- #
def cdee_tplinker_forward(hidden, params, num_relations, *, ti=16, tj=128):
    """Pallas implementation of CDEETPLinker.forward (shaking_mode='cat').

    Returns (h2t_hidden, h2h_hidden, t2t_hidden, tendency_logits) with shapes
      (B, P, 2), (B, R, P, 3), (B, R, P, 3), (B, P, 4),  P = T*(T+1)/2
    """
    B, T, H = hidden.shape
    R = num_relations
    P = T * (T + 1) // 2

    # ---- tiling / padding of the sequence axis (bf16-friendly granularity) ----
    t16 = _round_up(T, 16)
    TI = min(ti, t16)
    TJ = min(tj, t16)
    Tp = _round_up(T, TI * TJ // math.gcd(TI, TJ))
    hid_p = hidden if Tp == T else jnp.pad(hidden, ((0, 0), (0, Tp - T), (0, 0)))

    # ---- weight prep: split the handshaking fc, stack + pad all projection heads ----
    fc_w, fc_b = params["fc_w"], params["fc_b"]            # (H, 2H), (H,)
    w1t = fc_w[:, :H].T.astype(jnp.bfloat16)               # (H, H) acts on h_i (repeated)
    w2t = fc_w[:, H:].T.astype(jnp.bfloat16)               # (H, H) acts on h_j (visible)
    bfc = fc_b[None, :].astype(jnp.float32)                # (1, H)

    w_all = jnp.concatenate(
        [params["tend_w"], params["h2t_w"],
         params["h2h_w"].reshape(3 * R, H),
         params["t2t_w"].reshape(3 * R, H)], axis=0)       # (Dout, H)
    b_all = jnp.concatenate(
        [params["tend_b"], params["h2t_b"],
         params["h2h_b"].reshape(3 * R),
         params["t2t_b"].reshape(3 * R)], axis=0)          # (Dout,)
    Dout = int(w_all.shape[0])                             # 6 + 6R
    DP = _round_up(max(Dout, 128), 128)                    # lane-dense head dimension
    w_all_p = jnp.zeros((DP, H), w_all.dtype).at[:Dout].set(w_all)
    b_all_p = jnp.zeros((DP,), b_all.dtype).at[:Dout].set(b_all)
    wallt = w_all_p.T.astype(jnp.bfloat16)                 # (H, DP)
    ball = b_all_p[None, :].astype(jnp.float32)            # (1, DP)

    # ---- kernel 1: pre-activations of the handshaking fc, once per token ----
    pre_cost = pl.CostEstimate(
        flops=4 * B * Tp * H * H,
        transcendentals=0,
        bytes_accessed=B * Tp * H * 4 + 2 * B * Tp * H * 2 + 2 * H * H * 2)
    pre1, pre2 = pl.pallas_call(
        _precompute_kernel,
        out_shape=(jax.ShapeDtypeStruct((B, Tp, H), jnp.bfloat16),
                   jax.ShapeDtypeStruct((B, Tp, H), jnp.bfloat16)),
        grid=(B,),
        in_specs=[
            pl.BlockSpec((1, Tp, H), lambda b: (b, 0, 0)),     # hidden
            pl.BlockSpec((H, H), lambda b: (0, 0)),            # W1^T
            pl.BlockSpec((H, H), lambda b: (0, 0)),            # W2^T
            pl.BlockSpec((1, H), lambda b: (0, 0)),            # b_fc
        ],
        out_specs=[pl.BlockSpec((1, Tp, H), lambda b: (b, 0, 0)),
                   pl.BlockSpec((1, Tp, H), lambda b: (b, 0, 0))],
        compiler_params=pltpu.CompilerParams(dimension_semantics=("parallel",)),
        cost_estimate=pre_cost,
    )(hid_p, w1t, w2t, bfc)

    # ---- kernel 2: tiled pair grid -> tanh -> single lane-dense head matmul ----
    nit, njt = Tp // TI, Tp // TJ
    main_cost = pl.CostEstimate(
        flops=2 * B * Tp * Tp * H * DP + 2 * B * Tp * Tp * H,
        transcendentals=B * Tp * Tp * H,
        bytes_accessed=(B * (njt * Tp + nit * Tp) * H * 2
                        + B * Tp * Tp * DP * 4 + H * DP * 2))
    out_full = pl.pallas_call(
        _pair_logits_kernel,
        out_shape=jax.ShapeDtypeStruct((B, Tp, Tp, DP), jnp.float32),
        grid=(B, nit, njt),
        in_specs=[
            pl.BlockSpec((1, TI, H), lambda b, i, j: (b, i, 0)),   # pre1 (row side)
            pl.BlockSpec((1, TJ, H), lambda b, i, j: (b, j, 0)),   # pre2 (col side)
            pl.BlockSpec((H, DP), lambda b, i, j: (0, 0)),         # W_all^T (padded)
            pl.BlockSpec((1, DP), lambda b, i, j: (0, 0)),         # b_all (padded)
        ],
        out_specs=pl.BlockSpec((1, TI, TJ, DP), lambda b, i, j: (b, i, j, 0)),
        compiler_params=pltpu.CompilerParams(
            dimension_semantics=("parallel", "parallel", "parallel")),
        cost_estimate=main_cost,
    )(pre1, pre2, wallt, ball)

    # ---- wrapper glue: gather the upper-triangular pair ordering, split heads ----
    i_idx = np.array([i for i in range(T) for _ in range(i, T)], dtype=np.int32)
    j_idx = np.array([j for i in range(T) for j in range(i, T)], dtype=np.int32)
    flat_idx = jnp.asarray(i_idx * Tp + j_idx)
    out_pairs = jnp.take(out_full.reshape(B, Tp * Tp, DP), flat_idx, axis=1)  # (B, P, DP)

    tendency = out_pairs[..., 0:4]                                            # (B, P, 4)
    h2t = out_pairs[..., 4:6]                                                 # (B, P, 2)
    h2h = out_pairs[..., 6:6 + 3 * R].reshape(B, P, R, 3).transpose(0, 2, 1, 3)
    t2t = out_pairs[..., 6 + 3 * R:6 + 6 * R].reshape(B, P, R, 3).transpose(0, 2, 1, 3)
    return h2t, h2h, t2t, tendency


# --------------------------- Pure-JAX reference (for check) ---------------------------- #
def reference_forward(hidden, params, num_relations):
    B, T, H = hidden.shape
    outs = []
    for i in range(T):
        rep = jnp.repeat(hidden[:, i:i + 1, :], T - i, axis=1)
        vis = hidden[:, i:, :]
        cat = jnp.concatenate([rep, vis], axis=-1)
        outs.append(jnp.tanh(cat @ params["fc_w"].T + params["fc_b"]))
    shaking = jnp.concatenate(outs, axis=1)                                   # (B, P, H)
    tendency = shaking @ params["tend_w"].T + params["tend_b"]
    h2t = shaking @ params["h2t_w"].T + params["h2t_b"]
    h2h = jnp.stack([shaking @ params["h2h_w"][r].T + params["h2h_b"][r]
                     for r in range(num_relations)], axis=1)
    t2t = jnp.stack([shaking @ params["t2t_w"][r].T + params["t2t_b"][r]
                     for r in range(num_relations)], axis=1)
    return h2t, h2h, t2t, tendency


# ------------------------------------- Param init -------------------------------------- #
def init_params(key, hidden_size, num_relations):
    """Deterministic init mimicking nn.Linear's U(-1/sqrt(fan_in), +1/sqrt(fan_in))."""
    H, R = hidden_size, num_relations

    def linear(k, out_f, in_f):
        kw, kb = jax.random.split(k)
        bound = 1.0 / math.sqrt(in_f)
        w = jax.random.uniform(kw, (out_f, in_f), jnp.float32, -bound, bound)
        b = jax.random.uniform(kb, (out_f,), jnp.float32, -bound, bound)
        return w, b

    keys = jax.random.split(key, 4 + 2 * R)
    fc_w, fc_b = linear(keys[0], H, 2 * H)            # ConcatHandshaking.fc
    h2t_w, h2t_b = linear(keys[1], 2, H)              # h2t_proj
    tend_w, tend_b = linear(keys[2], 4, H)            # tendency_proj
    h2h = [linear(keys[3 + r], 3, H) for r in range(R)]
    t2t = [linear(keys[3 + R + r], 3, H) for r in range(R)]
    return {
        "fc_w": fc_w, "fc_b": fc_b,
        "h2t_w": h2t_w, "h2t_b": h2t_b,
        "tend_w": tend_w, "tend_b": tend_b,
        "h2h_w": jnp.stack([w for w, _ in h2h]), "h2h_b": jnp.stack([b for _, b in h2h]),
        "t2t_w": jnp.stack([w for w, _ in t2t]), "t2t_b": jnp.stack([b for _, b in t2t]),
    }


# ----------------------------------------- Main ----------------------------------------- #
if __name__ == "__main__":
    B, T, H, R = 2, 8, 32, 3
    key = jax.random.PRNGKey(0)
    k_x, k_p = jax.random.split(key)
    hidden = jax.random.normal(k_x, (B, T, H), dtype=jnp.float32)
    params = init_params(k_p, H, R)

    h2t, h2h, t2t, tendency = cdee_tplinker_forward(hidden, params, R)
    jax.block_until_ready((h2t, h2h, t2t, tendency))

    r_h2t, r_h2h, r_t2t, r_tend = reference_forward(hidden, params, R)
    # bf16 MXU inputs with fp32 accumulation -> loosened tolerances vs the fp32 reference.
    tol = dict(rtol=5e-2, atol=5e-2)
    np.testing.assert_allclose(np.asarray(h2t), np.asarray(r_h2t), **tol)
    np.testing.assert_allclose(np.asarray(h2h), np.asarray(r_h2h), **tol)
    np.testing.assert_allclose(np.asarray(t2t), np.asarray(r_t2t), **tol)
    np.testing.assert_allclose(np.asarray(tendency), np.asarray(r_tend), **tol)

    P = T * (T + 1) // 2
    assert h2t.shape == (B, P, 2)
    assert h2h.shape == (B, R, P, 3)
    assert t2t.shape == (B, R, P, 3)
    assert tendency.shape == (B, P, 4)
    print("KERNEL_OK")
</pallas_src>

<mosaic_0001>
module attributes {stable_mosaic.version = 11 : i64} {
  func.func @_precompute_kernel(%arg0: i32, %arg1: memref<1x16x32xf32, #tpu.memory_space<vmem>>, %arg2: memref<32x32xbf16, #tpu.memory_space<vmem>>, %arg3: memref<32x32xbf16, #tpu.memory_space<vmem>>, %arg4: memref<1x32xf32, #tpu.memory_space<vmem>>, %arg5: memref<1x16x32xbf16, #tpu.memory_space<vmem>>, %arg6: memref<1x16x32xbf16, #tpu.memory_space<vmem>>) attributes {dimension_semantics = [#tpu.dimension_semantics<parallel>], iteration_bounds = array<i64: 2>, scalar_prefetch = 0 : i64, scratch_operands = 0 : i64, tpu.core_type = #tpu.core_type<tc>, window_params = [{transform_indices = @transform_0, window_bounds = array<i64: 1, 16, 32>}, {pipeline_mode = #tpu.pipeline_mode<synchronous>, transform_indices = @transform_1, window_bounds = array<i64: 32, 32>}, {pipeline_mode = #tpu.pipeline_mode<synchronous>, transform_indices = @transform_2, window_bounds = array<i64: 32, 32>}, {pipeline_mode = #tpu.pipeline_mode<synchronous>, transform_indices = @transform_3, window_bounds = array<i64: 1, 32>}, {transform_indices = @transform_4, window_bounds = array<i64: 1, 16, 32>}, {transform_indices = @transform_5, window_bounds = array<i64: 1, 16, 32>}]} {
    %c0 = arith.constant 0 : index
    %c0_0 = arith.constant 0 : index
    %c0_1 = arith.constant 0 : index
    %0 = vector.load %arg1[%c0, %c0_0, %c0_1] : memref<1x16x32xf32, #tpu.memory_space<vmem>>, vector<1x16x32xf32>
    %1 = vector.shape_cast %0 : vector<1x16x32xf32> to vector<16x32xf32>
    %2 = arith.truncf %1 : vector<16x32xf32> to vector<16x32xbf16>
    %c0_2 = arith.constant 0 : index
    %c0_3 = arith.constant 0 : index
    %3 = vector.load %arg2[%c0_2, %c0_3] : memref<32x32xbf16, #tpu.memory_space<vmem>>, vector<32x32xbf16>
    %cst = arith.constant dense<0.000000e+00> : vector<16x32xf32>
    %4 = tpu.matmul %2, %3, %cst {dimension_numbers = #tpu.dot_dimension_numbers<[1], [0], [0], [1], [0, 0, 1, 1], [], []>} : vector<16x32xbf16>, vector<32x32xbf16>, vector<16x32xf32> -> vector<16x32xf32>
    %c0_4 = arith.constant 0 : index
    %c0_5 = arith.constant 0 : index
    %5 = vector.load %arg3[%c0_4, %c0_5] : memref<32x32xbf16, #tpu.memory_space<vmem>>, vector<32x32xbf16>
    %cst_6 = arith.constant dense<0.000000e+00> : vector<16x32xf32>
    %6 = tpu.matmul %2, %5, %cst_6 {dimension_numbers = #tpu.dot_dimension_numbers<[1], [0], [0], [1], [0, 0, 1, 1], [], []>} : vector<16x32xbf16>, vector<32x32xbf16>, vector<16x32xf32> -> vector<16x32xf32>
    %c0_7 = arith.constant 0 : index
    %c0_8 = arith.constant 0 : index
    %7 = vector.load %arg4[%c0_7, %c0_8] : memref<1x32xf32, #tpu.memory_space<vmem>>, vector<1x32xf32>
    %8 = vector.broadcast %7 : vector<1x32xf32> to vector<16x32xf32>
    %9 = arith.addf %6, %8 : vector<16x32xf32>
    %10 = arith.truncf %4 : vector<16x32xf32> to vector<16x32xbf16>
    %c0_9 = arith.constant 0 : index
    %c0_10 = arith.constant 0 : index
    %c0_11 = arith.constant 0 : index
    %11 = vector.load %arg5[%c0_9, %c0_10, %c0_11] : memref<1x16x32xbf16, #tpu.memory_space<vmem>>, vector<1x16x32xbf16>
    %12 = vector.shape_cast %11 : vector<1x16x32xbf16> to vector<16x32xbf16>
    %13 = vector.shape_cast %10 : vector<16x32xbf16> to vector<1x16x32xbf16>
    tpu.vector_store %arg5[%c0_9, %c0_10, %c0_11], %13 {strides = array<i32>} : memref<1x16x32xbf16, #tpu.memory_space<vmem>>, vector<1x16x32xbf16>,
    %14 = arith.truncf %9 : vector<16x32xf32> to vector<16x32xbf16>
    %c0_12 = arith.constant 0 : index
    %c0_13 = arith.constant 0 : index
    %c0_14 = arith.constant 0 : index
    %15 = vector.load %arg6[%c0_12, %c0_13, %c0_14] : memref<1x16x32xbf16, #tpu.memory_space<vmem>>, vector<1x16x32xbf16>
    %16 = vector.shape_cast %15 : vector<1x16x32xbf16> to vector<16x32xbf16>
    %17 = vector.shape_cast %14 : vector<16x32xbf16> to vector<1x16x32xbf16>
    tpu.vector_store %arg6[%c0_12, %c0_13, %c0_14], %17 {strides = array<i32>} : memref<1x16x32xbf16, #tpu.memory_space<vmem>>, vector<1x16x32xbf16>,
    return
  }
  func.func @transform_0(%arg0: i32) -> (i32, i32, i32) {
    %c0_i32 = arith.constant 0 : i32
    %c0_i32_0 = arith.constant 0 : i32
    %c0_i32_1 = arith.constant 0 : i32
    return %arg0, %c0_i32, %c0_i32_0 : i32, i32, i32
  }
  func.func @transform_1(%arg0: i32) -> (i32, i32) {
    %c0_i32 = arith.constant 0 : i32
    %c0_i32_0 = arith.constant 0 : i32
    %c0_i32_1 = arith.constant 0 : i32
    return %c0_i32, %c0_i32_0 : i32, i32
  }
  func.func @transform_2(%arg0: i32) -> (i32, i32) {
    %c0_i32 = arith.constant 0 : i32
    %c0_i32_0 = arith.constant 0 : i32
    %c0_i32_1 = arith.constant 0 : i32
    return %c0_i32, %c0_i32_0 : i32, i32
  }
  func.func @transform_3(%arg0: i32) -> (i32, i32) {
    %c0_i32 = arith.constant 0 : i32
    %c0_i32_0 = arith.constant 0 : i32
    %c0_i32_1 = arith.constant 0 : i32
    return %c0_i32, %c0_i32_0 : i32, i32
  }
  func.func @transform_4(%arg0: i32) -> (i32, i32, i32) {
    %c0_i32 = arith.constant 0 : i32
    %c0_i32_0 = arith.constant 0 : i32
    %c0_i32_1 = arith.constant 0 : i32
    return %arg0, %c0_i32, %c0_i32_0 : i32, i32, i32
  }
  func.func @transform_5(%arg0: i32) -> (i32, i32, i32) {
    %c0_i32 = arith.constant 0 : i32
    %c0_i32_0 = arith.constant 0 : i32
    %c0_i32_1 = arith.constant 0 : i32
    return %arg0, %c0_i32, %c0_i32_0 : i32, i32, i32
  }
}

</mosaic_0001>

<llo_original>
// kernel: tpu_custom_call.1
$region0: #{tpu_custom_call.1}
  #allocation0 [shape = 'u32[]', space=smem, size = 0x4, offset = 0x4, fixed_abs, tag = 'smem constant byte address 0x4 - core index']
  #allocation1 [shape = 'u32[144,128]{1,0:T(1,128)}', space=vmem, size = 0x12000, scoped, tag = 'internal scratch']
  %s0 = inlined_call_operand.hbm [shape: f32[2,16,32], index: 0, kind: input, shape index: {}]
  %s1 = inlined_call_operand.hbm [shape: bf16[32,32], index: 1, kind: input, shape index: {}]
  %s2 = inlined_call_operand.hbm [shape: bf16[32,32], index: 2, kind: input, shape index: {}]
  %s3 = inlined_call_operand.vmem [shape: f32[1,32], index: 3, kind: input, shape index: {}]
  %s4 = inlined_call_operand.hbm [shape: bf16[2,16,32], index: 4, kind: output, shape index: {0}]
  %s5 = inlined_call_operand.hbm [shape: bf16[2,16,32], index: 5, kind: output, shape index: {1}]
  %6 = xla_tuple %s4, %s5
  %s7 = sld [smem:[#allocation0]]
  $region69: #{tpu_custom_call.1} parent=0
    _
  %s9 = ssub.s32 1, %s7
  %s10 = scalar_select 0, %s9, %s7
  $region1: #{tpu_custom_call.1} parent=0
    #allocation2 [shape = 'u8[16384]{0}', space=vmem, size = 0x4000, scoped, tag = 'input window, operand 0']
    #allocation3 [shape = 's32[2]{0}', space=sflag, size = 0x8, scoped, tag = 'scoped memory for tpu_custom_call.1']
    #allocation4 [shape = 's32[2]{0}', space=sflag, size = 0x8, scoped, tag = 'scoped memory for tpu_custom_call.1']
    #allocation5 [shape = 'u8[8192]{0}', space=vmem, size = 0x2000, scoped, tag = 'input window, operand 1, single buffered']
    #allocation6 [shape = 's32[1]{0}', space=sflag, size = 0x4, scoped, tag = 'scoped memory for tpu_custom_call.1']
    #allocation7 [shape = 'u8[8192]{0}', space=vmem, size = 0x2000, scoped, tag = 'input window, operand 2, single buffered']
    #allocation8 [shape = 'u8[8192]{0}', space=vmem, size = 0x2000, scoped, tag = 'output window, operand 0']
    #allocation9 [shape = 'u8[8192]{0}', space=vmem, size = 0x2000, scoped, tag = 'output window, operand 1']
    #allocation10 [shape = 's32[2]{0}', space=sflag, size = 0x8, scoped, tag = 'scoped memory for tpu_custom_call.1']
    %11 = vsyncpa [#allocation3], 0
    %s12 = scalar_lea.sflag [#allocation3], 1
    %13 = vsyncpa %s12, 0
    %14 = vsyncpa [#allocation6], 0
    %15 = vsyncpa [#allocation4], 0
    %s16 = scalar_lea.sflag [#allocation4], 1
    %17 = vsyncpa %s16, 0
    %18 = vsyncpa [#allocation10], 0
    %s19 = scalar_lea.sflag [#allocation10], 1
    %20 = vsyncpa %s19, 0
    loop: start=0, step=1, limit=4
    $region2: #{tpu_custom_call.1} parent=1 // loop_pre_header
      _
    $region3: #{tpu_custom_call.1} parent=1 // loop_header
      %s22 = sphi 0, %s26
      %p23 = scmp.ge.s32.totalorder %s22, 4
      %s32 = sphi 0, %s34
      %s35 = sphi 0, %s32
      %s36 = sphi 0, %s35
      %s52 = sphi 0, %s36
      %s56 = sphi 0, %s56
      %s58 = sphi 0, %s56
      %s59 = sphi 0, %s58
      %s73 = sphi 0, %s59
      %s77 = sphi 0, %s77
      %s79 = sphi 0, %s77
      %s80 = sphi 0, %s79
      %s94 = sphi 0, %s80
      %s98 = sphi 0, %s98
      %s100 = sphi 0, %s98
      %s101 = sphi 0, %s100
      %s115 = sphi 0, %s101
      %s121 = sphi 0, %s123
      %s124 = sphi 0, %s121
      %s125 = sphi 0, %s124
      %s141 = sphi 0, %s125
      %s147 = sphi 0, %s149
      %s150 = sphi 0, %s147
      %s151 = sphi 0, %s150
      %s167 = sphi 0, %s151
    $region4: #{tpu_custom_call.1} parent=1 // loop_header_branch
      %25 = sbr.rel (%p23) target = $region8
    $region5: #{tpu_custom_call.1} parent=1 // loop_body
      %s27 = ssub.s32 %s22, 1
      %s28 = ssub.s32 %s22, 2
      %s29 = sadd.s32 %s22, 1
      %s30 = ssub.s32 %s22, %s29
      %p31 = scmp.eq.s32.totalorder %s30, 0
      %s33 = sadd.s32 %s32, 1
      %s34 = scalar_select %p31, %s32, %s33
      %p37 = pneg %p31
      %p38 = scmp.eq.s32.totalorder %s22, 1
      %p39 = por %p37, %p38
      %p40 = scmp.ne.s32.totalorder %s32, %s35
      %p41 = scmp.eq.s32.totalorder %s22, 0
      %p42 = por %p40, %p41
      %p43 = scmp.ne.s32.totalorder %s32, %s35
      %p44 = scmp.eq.s32.totalorder %s27, 1
      %p45 = por %p43, %p44
      %p46 = scmp.ne.s32.totalorder %s35, %s36
      %p47 = scmp.eq.s32.totalorder %s27, 0
      %p48 = por %p46, %p47
      %p49 = scmp.ne.s32.totalorder %s35, %s36
      %p50 = scmp.eq.s32.totalorder %s28, 1
      %p51 = por %p49, %p50
      %p53 = scmp.ne.s32.totalorder %s36, %s52
      %p54 = scmp.eq.s32.totalorder %s28, 0
      %p55 = por %p53, %p54
      %s57 = sadd.s32 %s56, 1
      %p60 = scmp.eq.s32.totalorder %s22, 1
      %p61 = scmp.ne.s32.totalorder %s56, %s58
      %p62 = scmp.eq.s32.totalorder %s22, 0
      %p63 = por %p61, %p62
      %p64 = scmp.ne.s32.totalorder %s56, %s58
      %p65 = scmp.eq.s32.totalorder %s27, 1
      %p66 = por %p64, %p65
      %p67 = scmp.ne.s32.totalorder %s58, %s59
      %p68 = scmp.eq.s32.totalorder %s27, 0
      %p69 = por %p67, %p68
      %p70 = scmp.ne.s32.totalorder %s58, %s59
      %p71 = scmp.eq.s32.totalorder %s28, 1
      %p72 = por %p70, %p71
      %p74 = scmp.ne.s32.totalorder %s59, %s73
      %p75 = scmp.eq.s32.totalorder %s28, 0
      %p76 = por %p74, %p75
      %s78 = sadd.s32 %s77, 1
      %p81 = scmp.eq.s32.totalorder %s22, 1
      %p82 = scmp.ne.s32.totalorder %s77, %s79
      %p83 = scmp.eq.s32.totalorder %s22, 0
      %p84 = por %p82, %p83
      %p85 = scmp.ne.s32.totalorder %s77, %s79
      %p86 = scmp.eq.s32.totalorder %s27, 1
      %p87 = por %p85, %p86
      %p88 = scmp.ne.s32.totalorder %s79, %s80
      %p89 = scmp.eq.s32.totalorder %s27, 0
      %p90 = por %p88, %p89
      %p91 = scmp.ne.s32.totalorder %s79, %s80
      %p92 = scmp.eq.s32.totalorder %s28, 1
      %p93 = por %p91, %p92
      %p95 = scmp.ne.s32.totalorder %s80, %s94
      %p96 = scmp.eq.s32.totalorder %s28, 0
      %p97 = por %p95, %p96
      %s99 = sadd.s32 %s98, 1
      %p102 = scmp.eq.s32.totalorder %s22, 1
      %p103 = scmp.ne.s32.totalorder %s98, %s100
      %p104 = scmp.eq.s32.totalorder %s22, 0
      %p105 = por %p103, %p104
      %p106 = scmp.ne.s32.totalorder %s98, %s100
      %p107 = scmp.eq.s32.totalorder %s27, 1
      %p108 = por %p106, %p107
      %p109 = scmp.ne.s32.totalorder %s100, %s101
      %p110 = scmp.eq.s32.totalorder %s27, 0
      %p111 = por %p109, %p110
      %p112 = scmp.ne.s32.totalorder %s100, %s101
      %p113 = scmp.eq.s32.totalorder %s28, 1
      %p114 = por %p112, %p113
      %p116 = scmp.ne.s32.totalorder %s101, %s115
      %p117 = scmp.eq.s32.totalorder %s28, 0
      %p118 = por %p116, %p117
      %s119 = ssub.s32 %s22, %s29
      %p120 = scmp.eq.s32.totalorder %s119, 0
      %s122 = sadd.s32 %s121, 1
      %s123 = scalar_select %p120, %s121, %s122
      %p126 = pneg %p120
      %p127 = scmp.eq.s32.totalorder %s22, 1
      %p128 = por %p126, %p127
      %p129 = scmp.ne.s32.totalorder %s121, %s124
      %p130 = scmp.eq.s32.totalorder %s22, 0
      %p131 = por %p129, %p130
      %p132 = scmp.ne.s32.totalorder %s121, %s124
      %p133 = scmp.eq.s32.totalorder %s27, 1
      %p134 = por %p132, %p133
      %p135 = scmp.ne.s32.totalorder %s124, %s125
      %p136 = scmp.eq.s32.totalorder %s27, 0
      %p137 = por %p135, %p136
      %p138 = scmp.ne.s32.totalorder %s124, %s125
      %p139 = scmp.eq.s32.totalorder %s28, 1
      %p140 = por %p138, %p139
      %p142 = scmp.ne.s32.totalorder %s125, %s141
      %p143 = scmp.eq.s32.totalorder %s28, 0
      %p144 = por %p142, %p143
      %s145 = ssub.s32 %s22, %s29
      %p146 = scmp.eq.s32.totalorder %s145, 0
      %s148 = sadd.s32 %s147, 1
      %s149 = scalar_select %p146, %s147, %s148
      %p152 = pneg %p146
      %p153 = scmp.eq.s32.totalorder %s22, 1
      %p154 = por %p152, %p153
      %p155 = scmp.ne.s32.totalorder %s147, %s150
      %p156 = scmp.eq.s32.totalorder %s22, 0
      %p157 = por %p155, %p156
      %p158 = scmp.ne.s32.totalorder %s147, %s150
      %p159 = scmp.eq.s32.totalorder %s27, 1
      %p160 = por %p158, %p159
      %p161 = scmp.ne.s32.totalorder %s150, %s151
      %p162 = scmp.eq.s32.totalorder %s27, 0
      %p163 = por %p161, %p162
      %p164 = scmp.ne.s32.totalorder %s150, %s151
      %p165 = scmp.eq.s32.totalorder %s28, 1
      %p166 = por %p164, %p165
      %p168 = scmp.ne.s32.totalorder %s151, %s167
      %p169 = scmp.eq.s32.totalorder %s28, 0
      %p170 = por %p168, %p169
      %p171 = scmp.le.s32.totalorder 1, %s22
      %p172 = scmp.lt.s32.totalorder %s22, 3
      %p173 = pnand %p171, %p172
      %p174 = pneg %p173
      // Predicated region
      $region9: #{tpu_custom_call.1} parent=5 // pred_check
        _
      $region10: #{tpu_custom_call.1} parent=5 // pred_check_branch
        %176 = sbr.rel (%p173) target = $region12
      $region11: #{tpu_custom_call.1} parent=5 // pred_region
        %s177 = ssub.s32 %s22, 1
        // Predicated region
        $region13: #{tpu_custom_call.1} parent=11 // pred_check
          %p178 = pneg %p69
        $region14: #{tpu_custom_call.1} parent=11 // pred_check_branch
          %180 = sbr.rel (%p178) target = $region16
        $region15: #{tpu_custom_call.1} parent=11 // pred_region
          %s182 = ssub.s32 256, 256
          %183 = vsyncadd [#allocation6], %s182
          %s184 = sshll.u32 [#allocation5], 4
          %s185 = int_to_ptr.vmem [resolvable:$true] %s184
          %190 = dma.hbm_to_vmem [thread:$0]  %s1, 256, %s185, [#allocation6], 64, 64, 4
        $region16: #{tpu_custom_call.1} parent=11 // pred_fallthru
          _
        // Predicated region
        $region17: #{tpu_custom_call.1} parent=11 // pred_check
          %p191 = pneg %p90
        $region18: #{tpu_custom_call.1} parent=11 // pred_check_branch
          %193 = sbr.rel (%p191) target = $region20
        $region19: #{tpu_custom_call.1} parent=11 // pred_region
          %s195 = ssub.s32 256, 256
          %196 = vsyncadd [#allocation6], %s195
          %s197 = sshll.u32 [#allocation7], 4
          %s198 = int_to_ptr.vmem [resolvable:$true] %s197
          %203 = dma.hbm_to_vmem [thread:$0]  %s2, 256, %s198, [#allocation6], 64, 64, 4
        $region20: #{tpu_custom_call.1} parent=11 // pred_fallthru
          _
        // Predicated region
        $region21: #{tpu_custom_call.1} parent=11 // pred_check
          %p204 = pneg %p111
        $region22: #{tpu_custom_call.1} parent=11 // pred_check_branch
          %206 = sbr.rel (%p204) target = $region24
        $region23: #{tpu_custom_call.1} parent=11 // pred_region
          _
        $region24: #{tpu_custom_call.1} parent=11 // pred_fallthru
          _
      $region12: #{tpu_custom_call.1} parent=5 // pred_fallthru
        _
      %p207 = scmp.lt.s32.totalorder %s22, 2
      // Predicated region
      $region25: #{tpu_custom_call.1} parent=5 // pred_check
        %p208 = pneg %p207
      $region26: #{tpu_custom_call.1} parent=5 // pred_check_branch
        %210 = sbr.rel (%p208) target = $region28
      $region27: #{tpu_custom_call.1} parent=5 // pred_region
        // Predicated region
        $region29: #{tpu_custom_call.1} parent=27 // pred_check
          %p211 = pneg %p42
        $region30: #{tpu_custom_call.1} parent=27 // pred_check_branch
          %213 = sbr.rel (%p211) target = $region32
        $region31: #{tpu_custom_call.1} parent=27 // pred_region
          %s214 = sand.u32 %s32, 1
          %s215 = scalar_lea.sflag [#allocation3], %s214
          %s216 = sand.u32 %s32, 1
          %s217 = smul.addr %s216, 16
          %s218 = scalar_lea.vmem [#allocation2], %s217
          %s220 = ssub.s32 256, 256
          %221 = vsyncadd %s215, %s220
          %s222 = smul.addr %s22, 2
          %s223 = smul.addr %s222, 128
          %s224 = scalar_lea.hbm %s0, %s223
          %s225 = sshll.u32 %s218, 4
          %s226 = int_to_ptr.vmem [resolvable:$true] %s225
          %231 = dma.hbm_to_vmem [thread:$0]  %s224, 256, %s226, %s215, 128, 128, 8
        $region32: #{tpu_custom_call.1} parent=27 // pred_fallthru
          _
      $region28: #{tpu_custom_call.1} parent=5 // pred_fallthru
        _
      %p232 = scmp.le.s32.totalorder 1, %s22
      %p233 = scmp.lt.s32.totalorder %s22, 3
      %p234 = pnand %p232, %p233
      %p235 = pneg %p234
      // Predicated region
      $region33: #{tpu_custom_call.1} parent=5 // pred_check
        _
      $region34: #{tpu_custom_call.1} parent=5 // pred_check_branch
        %237 = sbr.rel (%p234) target = $region36
      $region35: #{tpu_custom_call.1} parent=5 // pred_region
        %s238 = ssub.s32 %s22, 1
        %s239 = sand.u32 %s35, 1
        %s240 = scalar_lea.sflag [#allocation3], %s239
        %s241 = sand.u32 %s35, 1
        %s242 = smul.addr %s241, 16
        %s243 = scalar_lea.vmem [#allocation2], %s242
        // Predicated region
        $region37: #{tpu_custom_call.1} parent=35 // pred_check
          %p244 = pneg %p48
        $region38: #{tpu_custom_call.1} parent=35 // pred_check_branch
          %246 = sbr.rel (%p244) target = $region40
        $region39: #{tpu_custom_call.1} parent=35 // pred_region
          %247 = dma.done %s240, 256
        $region40: #{tpu_custom_call.1} parent=35 // pred_fallthru
          _
        // Predicated region
        $region41: #{tpu_custom_call.1} parent=35 // pred_check
          %p248 = pneg %p69
        $region42: #{tpu_custom_call.1} parent=35 // pred_check_branch
          %250 = sbr.rel (%p248) target = $region44
        $region43: #{tpu_custom_call.1} parent=35 // pred_region
          %251 = dma.done [#allocation6], 256
        $region44: #{tpu_custom_call.1} parent=35 // pred_fallthru
          _
        // Predicated region
        $region45: #{tpu_custom_call.1} parent=35 // pred_check
          %p252 = pneg %p90
        $region46: #{tpu_custom_call.1} parent=35 // pred_check_branch
          %254 = sbr.rel (%p252) target = $region48
        $region47: #{tpu_custom_call.1} parent=35 // pred_region
          %255 = dma.done [#allocation6], 256
        $region48: #{tpu_custom_call.1} parent=35 // pred_fallthru
          _
        %s256 = sand.u32 %s35, 1
        %s257 = scalar_lea.sflag [#allocation3], %s256
        %s258 = sand.u32 %s35, 1
        %s259 = smul.addr %s258, 16
        %s260 = scalar_lea.vmem [#allocation2], %s259
        %p261 = pneg %p48
        %p262 = pneg %p45
        %p263 = pneg %p69
        %p264 = pneg %p66
        %p265 = pneg %p90
        %p266 = pneg %p87
        %p267 = pneg %p111
        %p268 = pneg %p108
        %p269 = pneg %p137
        %p270 = pneg %p134
        %s271 = sand.u32 %s124, 1
        %s272 = scalar_lea.sflag [#allocation4], %s271
        %s273 = sand.u32 %s124, 1
        %s274 = smul.addr %s273, 8
        %s275 = scalar_lea.vmem [#allocation8], %s274
        %p276 = pneg %p163
        %p277 = pneg %p160
        %s278 = sand.u32 %s150, 1
        %s279 = scalar_lea.sflag [#allocation10], %s278
        %s280 = sand.u32 %s150, 1
        %s281 = smul.addr %s280, 8
        %s282 = scalar_lea.vmem [#allocation9], %s281
        %v284 = vld [vmem:[%s243] sm:$0xff]
        %v285 = vld [vmem:[%s243 + $0x8] sm:$0xff]
        %v286 = vpack.c.bf16 %v285, %v284
        %v287 = vld [vmem:[#allocation5] sm:$0xf]
        %v288 = vld [vmem:[#allocation5 + $0x4] sm:$0xf]
        %v289 = vld [vmem:[#allocation5 + $0x8] sm:$0xf]
        %v290 = vld [vmem:[#allocation5 + $0xc] sm:$0xf]
        %v295 = vunpack.c.l.b16 %v287
        %v296 = vunpack.c.l.b16 %v288
        %v297 = vunpack.c.l.b16 %v289
        %v298 = vunpack.c.l.b16 %v290
        %v299 = vpack.c.b16 %v296, %v295
        %v300 = vpack.c.b16 %v298, %v297
        %vm303 = vcmask 261120
        %v305 = vsel %vm303, %v286, 0
        %307 = vmatprep.subr.bf16.mxu0 0
        %308 = vmatpush1.bf16.msra.mxu0 %v299
        %309 = vmatprep.subr.bf16.mxu0 0
        %310 = vmatpush1.bf16.msra.mxu0 %v300
        %311 = vmatprep.subr.bf16.mxu0 0
        %312 = vmatpush1.bf16.msra.mxu0 0
        %313 = vmatprep.subr.bf16.mxu0 0
        %314 = vmatpush1.bf16.msra.mxu0 0
        %315 = vmatprep.subr.bf16.mxu0 0
        %316 = vmatpush1.bf16.msra.mxu0 0
        %317 = vmatprep.subr.bf16.mxu0 0
        %318 = vmatpush1.bf16.msra.mxu0 0
        %319 = vmatprep.subr.bf16.mxu0 0
        %320 = vmatpush1.bf16.msra.mxu0 0
        %321 = vmatprep.subr.bf16.mxu0 0
        %322 = vmatpush1.bf16.msra.mxu0 0
        %323 = vmatprep.subr.bf16.mxu0 0
        %324 = vmatpush1.bf16.msra.mxu0 0
        %325 = vmatprep.subr.bf16.mxu0 0
        %326 = vmatpush1.bf16.msra.mxu0 0
        %327 = vmatprep.subr.bf16.mxu0 0
        %328 = vmatpush1.bf16.msra.mxu0 0
        %329 = vmatprep.subr.bf16.mxu0 0
        %330 = vmatpush1.bf16.msra.mxu0 0
        %331 = vmatprep.subr.bf16.mxu0 0
        %332 = vmatpush1.bf16.msra.mxu0 0
        %333 = vmatprep.subr.bf16.mxu0 0
        %334 = vmatpush1.bf16.msra.mxu0 0
        %335 = vmatprep.subr.bf16.mxu0 0
        %336 = vmatpush1.bf16.msra.mxu0 0
        %337 = vmatprep.subr.bf16.mxu0 0
        %338 = vmatpush1.bf16.msra.mxu0 0
        %339 = vmatprep.mubr.bf16.mxu0 0
        %340 = vmatmul.mubr.bf16.gmra.mrb[0].mxu0 %v305
        %v341 = vpop.f32.mrb[0].mxu0
        %v342 = vadd.f32 0.0, %v341
        %v343 = vpop.f32.mrb[0].mxu0
        %v344 = vpop.f32.mrb[0].mxu0
        %v345 = vadd.f32 0.0, %v344
        %v346 = vpop.f32.mrb[0].mxu0
        %347 = vdwg.mxu0
        %v348 = vld [vmem:[#allocation7] sm:$0xf]
        %v349 = vld [vmem:[#allocation7 + $0x4] sm:$0xf]
        %v350 = vld [vmem:[#allocation7 + $0x8] sm:$0xf]
        %v351 = vld [vmem:[#allocation7 + $0xc] sm:$0xf]
        %v352 = vld [vmem:[%s3] sm:$0x1]
        %v354 = vlaneseq
        %v355 = vshrl.u32 %v354, 7
        %v356 = vsub.s32 0, %v355
        %v357 = vrot.slane %v352, %v356
        %v363 = vunpack.c.l.b16 %v348
        %v364 = vunpack.c.l.b16 %v349
        %v365 = vunpack.c.l.b16 %v350
        %v366 = vunpack.c.l.b16 %v351
        %v367 = vpack.c.b16 %v364, %v363
        %v368 = vpack.c.b16 %v366, %v365
        %371 = vmatprep.subr.bf16.mxu0 0
        %372 = vmatpush1.bf16.msra.mxu0 %v367
        %373 = vmatprep.subr.bf16.mxu0 0
        %374 = vmatpush1.bf16.msra.mxu0 %v368
        %375 = vmatprep.subr.bf16.mxu0 0
        %376 = vmatpush1.bf16.msra.mxu0 0
        %377 = vmatprep.subr.bf16.mxu0 0
        %378 = vmatpush1.bf16.msra.mxu0 0
        %379 = vmatprep.subr.bf16.mxu0 0
        %380 = vmatpush1.bf16.msra.mxu0 0
        %381 = vmatprep.subr.bf16.mxu0 0
        %382 = vmatpush1.bf16.msra.mxu0 0
        %383 = vmatprep.subr.bf16.mxu0 0
        %384 = vmatpush1.bf16.msra.mxu0 0
        %385 = vmatprep.subr.bf16.mxu0 0
        %386 = vmatpush1.bf16.msra.mxu0 0
        %387 = vmatprep.subr.bf16.mxu0 0
        %388 = vmatpush1.bf16.msra.mxu0 0
        %389 = vmatprep.subr.bf16.mxu0 0
        %390 = vmatpush1.bf16.msra.mxu0 0
        %391 = vmatprep.subr.bf16.mxu0 0
        %392 = vmatpush1.bf16.msra.mxu0 0
        %393 = vmatprep.subr.bf16.mxu0 0
        %394 = vmatpush1.bf16.msra.mxu0 0
        %395 = vmatprep.subr.bf16.mxu0 0
        %396 = vmatpush1.bf16.msra.mxu0 0
        %397 = vmatprep.subr.bf16.mxu0 0
        %398 = vmatpush1.bf16.msra.mxu0 0
        %399 = vmatprep.subr.bf16.mxu0 0
        %400 = vmatpush1.bf16.msra.mxu0 0
        %401 = vmatprep.subr.bf16.mxu0 0
        %402 = vmatpush1.bf16.msra.mxu0 0
        %403 = vmatprep.mubr.bf16.mxu0 0
        %404 = vmatmul.mubr.bf16.gmra.mrb[0].mxu0 %v305
        %v405 = vpop.f32.mrb[0].mxu0
        %v406 = vadd.f32 %v357, %v405
        %v407 = vpop.f32.mrb[0].mxu0
        %v408 = vpop.f32.mrb[0].mxu0
        %v409 = vadd.f32 %v357, %v408
        %v410 = vpop.f32.mrb[0].mxu0
        %411 = vdwg.mxu0
        %v412 = vpack.c.bf16 %v345, %v342
        %v414 = vunpack.c.l.b16 %v412
        %v415 = vunpack.c.h.b16 %v412
        %v416 = vpack.c.b16 %v414, %v414
        %v417 = vpack.c.b16 %v415, %v415
        %vm420 = vcmask 257024
        %421 = vst.msk [vmem:[%s275] sm:$0xf] %vm420, %v416
        %422 = vst.msk [vmem:[%s275 + $0x4] sm:$0xf] %vm420, %v417
        %v423 = vpack.c.bf16 %v409, %v406
        %v425 = vunpack.c.l.b16 %v423
        %v426 = vunpack.c.h.b16 %v423
        %v427 = vpack.c.b16 %v425, %v425
        %v428 = vpack.c.b16 %v426, %v426
        %431 = vst.msk [vmem:[%s282] sm:$0xf] %vm420, %v427
        %432 = vst.msk [vmem:[%s282 + $0x4] sm:$0xf] %vm420, %v428
        %s433 = sand.u32 %s124, 1
        %s434 = scalar_lea.sflag [#allocation4], %s433
        %s435 = sand.u32 %s124, 1
        %s436 = smul.addr %s435, 8
        %s437 = scalar_lea.vmem [#allocation8], %s436
        %s438 = sand.u32 %s150, 1
        %s439 = scalar_lea.sflag [#allocation10], %s438
        %s440 = sand.u32 %s150, 1
        %s441 = smul.addr %s440, 8
        %s442 = scalar_lea.vmem [#allocation9], %s441
        // Predicated region
        $region49: #{tpu_custom_call.1} parent=35 // pred_check
          %p443 = pneg %p134
        $region50: #{tpu_custom_call.1} parent=35 // pred_check_branch
          %445 = sbr.rel (%p443) target = $region52
        $region51: #{tpu_custom_call.1} parent=35 // pred_region
          %s447 = ssub.s32 128, 128
          %448 = vsyncadd %s434, %s447
          %s449 = smul.addr %s27, 2
          %s450 = smul.addr %s449, 64
          %s451 = scalar_lea.hbm %s4, %s450
          %s452 = sshll.u32 %s437, 4
          %s453 = int_to_ptr.vmem [resolvable:$true] %s452
          %458 = dma.vmem_to_hbm [thread:$0]  %s453, 128, %s451, %s434, 64, 64, 4
        $region52: #{tpu_custom_call.1} parent=35 // pred_fallthru
          _
        // Predicated region
        $region53: #{tpu_custom_call.1} parent=35 // pred_check
          %p459 = pneg %p160
        $region54: #{tpu_custom_call.1} parent=35 // pred_check_branch
          %461 = sbr.rel (%p459) target = $region56
        $region55: #{tpu_custom_call.1} parent=35 // pred_region
          %s463 = ssub.s32 128, 128
          %464 = vsyncadd %s439, %s463
          %s465 = smul.addr %s27, 2
          %s466 = smul.addr %s465, 64
          %s467 = scalar_lea.hbm %s5, %s466
          %s468 = sshll.u32 %s442, 4
          %s469 = int_to_ptr.vmem [resolvable:$true] %s468
          %474 = dma.vmem_to_hbm [thread:$0]  %s469, 128, %s467, %s439, 64, 64, 4
        $region56: #{tpu_custom_call.1} parent=35 // pred_fallthru
          _
      $region36: #{tpu_custom_call.1} parent=5 // pred_fallthru
        _
      %p475 = scmp.le.s32.totalorder 2, %s22
      // Predicated region
      $region57: #{tpu_custom_call.1} parent=5 // pred_check
        %p476 = pneg %p475
      $region58: #{tpu_custom_call.1} parent=5 // pred_check_branch
        %478 = sbr.rel (%p476) target = $region60
      $region59: #{tpu_custom_call.1} parent=5 // pred_region
        %s479 = ssub.s32 %s22, 2
        // Predicated region
        $region61: #{tpu_custom_call.1} parent=59 // pred_check
          %p480 = pneg %p140
        $region62: #{tpu_custom_call.1} parent=59 // pred_check_branch
          %482 = sbr.rel (%p480) target = $region64
        $region63: #{tpu_custom_call.1} parent=59 // pred_region
          %s483 = sand.u32 %s125, 1
          %s484 = scalar_lea.sflag [#allocation4], %s483
          %s485 = sand.u32 %s125, 1
          %s486 = smul.addr %s485, 8
          %s487 = scalar_lea.vmem [#allocation8], %s486
          %488 = dma.done %s484, 128
        $region64: #{tpu_custom_call.1} parent=59 // pred_fallthru
          _
        // Predicated region
        $region65: #{tpu_custom_call.1} parent=59 // pred_check
          %p489 = pneg %p166
        $region66: #{tpu_custom_call.1} parent=59 // pred_check_branch
          %491 = sbr.rel (%p489) target = $region68
        $region67: #{tpu_custom_call.1} parent=59 // pred_region
          %s492 = sand.u32 %s151, 1
          %s493 = scalar_lea.sflag [#allocation10], %s492
          %s494 = sand.u32 %s151, 1
          %s495 = smul.addr %s494, 8
          %s496 = scalar_lea.vmem [#allocation9], %s495
          %497 = dma.done %s493, 128
        $region68: #{tpu_custom_call.1} parent=59 // pred_fallthru
          _
      $region60: #{tpu_custom_call.1} parent=5 // pred_fallthru
        _
    $region6: #{tpu_custom_call.1} parent=1 // loop_footer
      %s26 = sadd.s32 1, %s22
    $region7: #{tpu_custom_call.1} parent=1 // loop_footer_branch
      %21 = sbr.rel target = $region3
    $region8: #{tpu_custom_call.1} parent=1 // loop_exit
      _
    %498 = vsyncpa [#allocation3], 1
    %s499 = scalar_lea.sflag [#allocation3], 1
    %500 = vsyncpa %s499, 1
    %501 = vsyncpa [#allocation6], 1
    %502 = vsyncpa [#allocation4], 1
    %s503 = scalar_lea.sflag [#allocation4], 1
    %504 = vsyncpa %s503, 1
    %505 = vsyncpa [#allocation10], 1
    %s506 = scalar_lea.sflag [#allocation10], 1
    %507 = vsyncpa %s506, 1

</llo_original>
